<compile_context>
chip_gen: v5e
topology: v5e:2x2
jax: 0.10.0
libtpu: 0.0.40
codegen_flags: <defaults>
</compile_context>

<pallas_src>
import jax
import jax.numpy as jnp
from jax import lax
from jax.experimental import pallas as pl
from jax.experimental.pallas import tpu as pltpu

VMEM_SPEC = pl.BlockSpec(memory_space=pltpu.MemorySpace.VMEM)
_VMEM_LIMIT = 32 * 1024 * 1024          # explicit, safe on v5e/v6e/v7x
HEAD_PAD = 128                          # pad tiny head outputs to a full lane width


def _round_up(x, m):
    return (x + m - 1) // m * m


# ------------------------------------------------------------------ kernel 1 --
def tune_kernel(x_ref, w_ref, b_ref, o_ref):
    y = jnp.dot(x_ref[...], w_ref[...], preferred_element_type=jnp.float32)
    o_ref[...] = jnp.tanh(y + b_ref[...])


def tune_embeddings(x, w_bf16, b):
    """tanh(x @ W + b); x:(M,K) bf16-cast, tiled over M."""
    M, K = x.shape
    T = w_bf16.shape[1]
    # Row tile: multiple of 16 (bf16 sublane packing); capped so double-buffered
    # (tm,K)+(tm,T) tiles + weights stay well inside VMEM on v5e/v6e/v7x.
    # TODO(synk): sweep tm (512/1024/2048) per chip generation at real ELMo sizes.
    tm = min(512, _round_up(M, 16))
    M_pad = _round_up(M, tm)
    if M_pad != M:
        x = jnp.pad(x, ((0, M_pad - M), (0, 0)))
    out = pl.pallas_call(
        tune_kernel,
        out_shape=jax.ShapeDtypeStruct((M_pad, T), jnp.float32),
        grid=(M_pad // tm,),
        in_specs=[
            pl.BlockSpec((tm, K), lambda i: (i, 0)),
            pl.BlockSpec((K, T), lambda i: (0, 0)),
            pl.BlockSpec((1, T), lambda i: (0, 0)),
        ],
        out_specs=pl.BlockSpec((tm, T), lambda i: (i, 0)),
        compiler_params=pltpu.CompilerParams(
            dimension_semantics=("parallel",),
            vmem_limit_bytes=_VMEM_LIMIT,
        ),
    )(x.astype(jnp.bfloat16), w_bf16, b)
    return out[:M]


# ------------------------------------------------------------------ kernel 2 --
def fused_heads_kernel(tuned_ref, roots_ref,
                       wdur_ref, bdur_ref, wrel_ref, brel_ref,
                       wd1_ref, bd1_ref, wd2_ref, bd2_ref,
                       wr1_ref, br1_ref, wr2_ref, br2_ref,
                       dur_out_ref, rel_out_ref):
    tuned = tuned_ref[...]                                   # (B, S, T), read ONCE
    B, S, T = tuned.shape

    # ---- root-token gather (event_attention='root') via one-hot MXU matmul ----
    roots = roots_ref[...]                                   # (B, 2, 1) int32
    iota_s = lax.broadcasted_iota(jnp.int32, (B, 2, S), 2)
    onehot = (iota_s == roots).astype(jnp.float32)           # (B, 2, S)
    preds = jnp.einsum('bqs,bst->bqt', onehot, tuned,
                       preferred_element_type=jnp.float32)   # (B, 2, T)
    pred1 = preds[:, 0, :]
    pred2 = preds[:, 1, :]

    # ---- attention queries (dur_attention='param', rel_attention='param') ----
    att1 = jnp.tanh(jnp.dot(pred1, wdur_ref[...],
                            preferred_element_type=jnp.float32) + bdur_ref[...])
    att2 = jnp.tanh(jnp.dot(pred2, wdur_ref[...],
                            preferred_element_type=jnp.float32) + bdur_ref[...])
    rel_q = jnp.concatenate([pred1, pred2], axis=1)          # (B, 2T)
    att_r = jnp.tanh(jnp.dot(rel_q, wrel_ref[...],
                             preferred_element_type=jnp.float32) + brel_ref[...])

    # ---- all three attention passes share the single read of `tuned` ----
    q = jnp.concatenate([att1[:, None, :], att2[:, None, :], att_r[:, None, :]],
                        axis=1)                              # (B, 3, T)
    raw = jnp.einsum('bqt,bst->bqs', q, tuned,
                     preferred_element_type=jnp.float32)     # (B, 3, S)
    # NOTE: exact `== 0` padding mask inherited from the torch reference
    # (masked_fill(att_raw == 0, -inf)).  Kept for semantic parity; it is a
    # fragile float test and would NaN if an entire row masked out.
    raw = jnp.where(raw == 0.0, -jnp.inf, raw)
    m = jnp.max(raw, axis=-1, keepdims=True)
    e = jnp.exp(raw - m)
    att = e * pl.reciprocal(jnp.sum(e, axis=-1, keepdims=True), approx=True)
    ctx = jnp.einsum('bqs,bst->bqt', att, tuned,
                     preferred_element_type=jnp.float32)     # (B, 3, T)

    # ---- duration head: both predicates through the shared MLP in one matmul ----
    dur_in = jnp.concatenate(
        [jnp.concatenate([pred1, ctx[:, 0, :]], axis=1),
         jnp.concatenate([pred2, ctx[:, 1, :]], axis=1)], axis=0)   # (2B, 2T)
    h = jnp.tanh(jnp.dot(dur_in, wd1_ref[...],
                         preferred_element_type=jnp.float32) + bd1_ref[...])
    dur_out_ref[...] = jnp.dot(h, wd2_ref[...],
                               preferred_element_type=jnp.float32) + bd2_ref[...]

    # ---- fine/coarse/coarser heads fused via block-diagonal weights ----
    rel_in = jnp.concatenate([pred1, pred2, ctx[:, 2, :]], axis=1)  # (B, 3T)
    hr = jnp.tanh(jnp.dot(rel_in, wr1_ref[...],
                          preferred_element_type=jnp.float32) + br1_ref[...])
    y = jnp.dot(hr, wr2_ref[...],
                preferred_element_type=jnp.float32) + br2_ref[...]   # (B, HEAD_PAD)
    col = lax.broadcasted_iota(jnp.int32, y.shape, 1)
    rel_out_ref[...] = jnp.where(col < 4, jax.nn.sigmoid(y), y)      # sigmoid on 'fine' only


def fused_heads(tuned, root_idxs, fp):
    B = tuned.shape[0]
    return pl.pallas_call(
        fused_heads_kernel,
        out_shape=(jax.ShapeDtypeStruct((2 * B, HEAD_PAD), jnp.float32),
                   jax.ShapeDtypeStruct((B, HEAD_PAD), jnp.float32)),
        in_specs=[VMEM_SPEC] * 14,
        out_specs=(VMEM_SPEC, VMEM_SPEC),
        compiler_params=pltpu.CompilerParams(vmem_limit_bytes=_VMEM_LIMIT),
    )(tuned, root_idxs[:, :, None].astype(jnp.int32),
      fp["W_dur"], fp["b_dur"], fp["W_rel"], fp["b_rel"],
      fp["Wd1"], fp["bd1"], fp["Wd2"], fp["bd2"],
      fp["Wr1"], fp["br1"], fp["Wr2"], fp["br2"])


# --------------------------------------------------------------- parameters --
def linear_params(key, in_f, out_f):
    """Deterministic PyTorch-style uniform(-1/sqrt(fan_in), 1/sqrt(fan_in)) init."""
    k_w, k_b = jax.random.split(key)
    bound = 1.0 / float(in_f) ** 0.5
    w = jax.random.uniform(k_w, (in_f, out_f), jnp.float32, -bound, bound)
    b = jax.random.uniform(k_b, (1, out_f), jnp.float32, -bound, bound)
    return w, b


def init_params(key, embedding_size, tune_embed_size, hidden=24,
                dur_out=11, fine_out=4, coarse_out=7, coarser_out=13):
    T = tune_embed_size
    keys = jax.random.split(key, 12)
    p = {}
    p["W_tune"], p["b_tune"] = linear_params(keys[0], embedding_size * 3, T)
    # event_attention='root' -> no event_att_map
    p["W_dur"], p["b_dur"] = linear_params(keys[1], T, T)          # dur_att_map: Linear(T, T)
    p["W_rel"], p["b_rel"] = linear_params(keys[2], 2 * T, T)      # rel_att_map: Linear(2T, T)
    p["duration"] = linear_params(keys[3], 2 * T, hidden) + linear_params(keys[4], hidden, dur_out)
    p["fine"]     = linear_params(keys[5], 3 * T, hidden) + linear_params(keys[6], hidden, fine_out)
    p["coarse"]   = linear_params(keys[7], 3 * T, hidden) + linear_params(keys[8], hidden, coarse_out)
    p["coarser"]  = linear_params(keys[9], 3 * T, hidden) + linear_params(keys[10], hidden, coarser_out)
    return p


def prepare_params(p, dur_out=11, fine_out=4, coarse_out=7, coarser_out=13):
    """Fuse/pad parameters for the two-kernel forward (done once)."""
    fp = {
        "W_tune": p["W_tune"].astype(jnp.bfloat16),   # bf16 MXU path, f32 accumulation
        "b_tune": p["b_tune"],
        "W_dur": p["W_dur"], "b_dur": p["b_dur"],
        "W_rel": p["W_rel"], "b_rel": p["b_rel"],
    }
    # Duration head: output lanes padded dur_out -> HEAD_PAD (unmasked stores).
    wd1, bd1, wd2, bd2 = p["duration"]
    hd = wd2.shape[0]
    fp["Wd1"], fp["bd1"] = wd1, bd1
    fp["Wd2"] = jnp.zeros((hd, HEAD_PAD), jnp.float32).at[:, :dur_out].set(wd2)
    fp["bd2"] = jnp.zeros((1, HEAD_PAD), jnp.float32).at[:, :dur_out].set(bd2)
    # fine/coarse/coarser fused into one head: W1 concatenated along hidden axis,
    # W2 block-diagonal, output lanes padded to HEAD_PAD.
    wf1, bf1, wf2, bf2 = p["fine"]
    wc1, bc1, wc2, bc2 = p["coarse"]
    wx1, bx1, wx2, bx2 = p["coarser"]
    h = wf2.shape[0]
    fp["Wr1"] = jnp.concatenate([wf1, wc1, wx1], axis=1)            # (3T, 3H)
    fp["br1"] = jnp.concatenate([bf1, bc1, bx1], axis=1)            # (1, 3H)
    w2 = jnp.zeros((3 * h, HEAD_PAD), jnp.float32)
    w2 = w2.at[0:h, 0:fine_out].set(wf2)
    w2 = w2.at[h:2 * h, fine_out:fine_out + coarse_out].set(wc2)
    w2 = w2.at[2 * h:3 * h,
               fine_out + coarse_out:fine_out + coarse_out + coarser_out].set(wx2)
    fp["Wr2"] = w2
    b2 = jnp.zeros((1, HEAD_PAD), jnp.float32)
    b2 = b2.at[:, 0:fine_out].set(bf2)
    b2 = b2.at[:, fine_out:fine_out + coarse_out].set(bc2)
    b2 = b2.at[:, fine_out + coarse_out:fine_out + coarse_out + coarser_out].set(bx2)
    fp["br2"] = b2
    return fp


# ------------------------------------------------------------------ forward --
def temporal_model_forward(fp, elmo_embeds, root_idxs,
                           dur_out=11, fine_out=4, coarse_out=7, coarser_out=13):
    """
    elmo_embeds: (B, 3, S, E) float32 -- stands in for elmo_class.batch_to_embeddings()[0]
    root_idxs:   (B, 2) int32 -- (pred1_root, pred2_root) per sentence
    spans are unused because event_attention='root' (default).
    """
    B, L, S, E = elmo_embeds.shape
    T = fp["W_tune"].shape[1]

    # torch: inputs.view(B, S, -1)  (raw row-major reshape of the contiguous tensor)
    x = elmo_embeds.reshape(B, S, L * E)

    # kernel 1: _tune_embeddings = tanh(Linear(3E -> T)), tiled over B*S rows
    tuned = tune_embeddings(x.reshape(B * S, L * E), fp["W_tune"], fp["b_tune"])
    tuned = tuned.reshape(B, S, T)

    # kernel 2: root gather + dur/dur/rel attention + all five regression heads
    dur_y, rel_y = fused_heads(tuned, root_idxs, fp)

    pred1_dur = dur_y[:B, :dur_out]
    pred2_dur = dur_y[B:, :dur_out]
    fine      = rel_y[:, :fine_out]
    coarse    = rel_y[:, fine_out:fine_out + coarse_out]
    coarser   = rel_y[:, fine_out + coarse_out:fine_out + coarse_out + coarser_out]

    # TODO(synk): duration_distr=True Binomial.log_prob branch not implemented (default is False).
    return pred1_dur, pred2_dur, fine, coarse, coarser


# --------------------------------------------------------------------- main --
if __name__ == "__main__":
    # Small but structurally faithful shapes:
    B, S, E, T = 2, 8, 64, 32   # batch, seq len, per-layer "ELMo" dim, tuned embed dim
    key = jax.random.PRNGKey(0)
    k_param, k_in, k_root = jax.random.split(key, 3)

    params = init_params(k_param, embedding_size=E, tune_embed_size=T)
    fused_params = prepare_params(params)

    elmo_embeds = jax.random.normal(k_in, (B, 3, S, E), dtype=jnp.float32)
    root_idxs = jax.random.randint(k_root, (B, 2), 0, S, dtype=jnp.int32)

    outs = temporal_model_forward(fused_params, elmo_embeds, root_idxs)
    outs = jax.block_until_ready(outs)

    expected_shapes = [(B, 11), (B, 11), (B, 4), (B, 7), (B, 13)]
    assert [tuple(o.shape) for o in outs] == expected_shapes, \
        f"shape mismatch: {[o.shape for o in outs]}"
    assert all(bool(jnp.all(jnp.isfinite(o))) for o in outs), "non-finite output"

    print("KERNEL_OK")
</pallas_src>

<mosaic_0001>
module attributes {stable_mosaic.version = 11 : i64} {
  func.func @tune_kernel(%arg0: i32, %arg1: memref<16x192xbf16, #tpu.memory_space<vmem>>, %arg2: memref<192x32xbf16, #tpu.memory_space<vmem>>, %arg3: memref<1x32xf32, #tpu.memory_space<vmem>>, %arg4: memref<16x32xf32, #tpu.memory_space<vmem>>) attributes {dimension_semantics = [#tpu.dimension_semantics<parallel>], iteration_bounds = array<i64: 1>, scalar_prefetch = 0 : i64, scratch_operands = 0 : i64, tpu.core_type = #tpu.core_type<tc>, window_params = [{transform_indices = @transform_0, window_bounds = array<i64: 16, 192>}, {pipeline_mode = #tpu.pipeline_mode<synchronous>, transform_indices = @transform_1, window_bounds = array<i64: 192, 32>}, {pipeline_mode = #tpu.pipeline_mode<synchronous>, transform_indices = @transform_2, window_bounds = array<i64: 1, 32>}, {transform_indices = @transform_3, window_bounds = array<i64: 16, 32>}]} {
    %c0 = arith.constant 0 : index
    %c0_0 = arith.constant 0 : index
    %0 = vector.load %arg1[%c0, %c0_0] : memref<16x192xbf16, #tpu.memory_space<vmem>>, vector<16x192xbf16>
    %c0_1 = arith.constant 0 : index
    %c0_2 = arith.constant 0 : index
    %1 = vector.load %arg2[%c0_1, %c0_2] : memref<192x32xbf16, #tpu.memory_space<vmem>>, vector<192x32xbf16>
    %cst = arith.constant dense<0.000000e+00> : vector<16x32xf32>
    %2 = tpu.matmul %0, %1, %cst {dimension_numbers = #tpu.dot_dimension_numbers<[1], [0], [0], [1], [0, 0, 1, 1], [], []>} : vector<16x192xbf16>, vector<192x32xbf16>, vector<16x32xf32> -> vector<16x32xf32>
    %c0_3 = arith.constant 0 : index
    %c0_4 = arith.constant 0 : index
    %3 = vector.load %arg3[%c0_3, %c0_4] : memref<1x32xf32, #tpu.memory_space<vmem>>, vector<1x32xf32>
    %4 = vector.broadcast %3 : vector<1x32xf32> to vector<16x32xf32>
    %5 = arith.addf %2, %4 : vector<16x32xf32>
    %6 = math.tanh %5 : vector<16x32xf32>
    %c0_5 = arith.constant 0 : index
    %c0_6 = arith.constant 0 : index
    %7 = vector.load %arg4[%c0_5, %c0_6] : memref<16x32xf32, #tpu.memory_space<vmem>>, vector<16x32xf32>
    tpu.vector_store %arg4[%c0_5, %c0_6], %6 {strides = array<i32>} : memref<16x32xf32, #tpu.memory_space<vmem>>, vector<16x32xf32>,
    return
  }
  func.func @transform_0(%arg0: i32) -> (i32, i32) {
    %c0_i32 = arith.constant 0 : i32
    %c0_i32_0 = arith.constant 0 : i32
    return %arg0, %c0_i32 : i32, i32
  }
  func.func @transform_1(%arg0: i32) -> (i32, i32) {
    %c0_i32 = arith.constant 0 : i32
    %c0_i32_0 = arith.constant 0 : i32
    %c0_i32_1 = arith.constant 0 : i32
    return %c0_i32, %c0_i32_0 : i32, i32
  }
  func.func @transform_2(%arg0: i32) -> (i32, i32) {
    %c0_i32 = arith.constant 0 : i32
    %c0_i32_0 = arith.constant 0 : i32
    %c0_i32_1 = arith.constant 0 : i32
    return %c0_i32, %c0_i32_0 : i32, i32
  }
  func.func @transform_3(%arg0: i32) -> (i32, i32) {
    %c0_i32 = arith.constant 0 : i32
    %c0_i32_0 = arith.constant 0 : i32
    return %arg0, %c0_i32 : i32, i32
  }
}

</mosaic_0001>

<llo_original>
// kernel: tpu_custom_call.1
$region0: #{tpu_custom_call.1}
  #allocation0 [shape = 'u32[]', space=smem, size = 0x4, offset = 0x4, fixed_abs, tag = 'smem constant byte address 0x4 - core index']
  #allocation1 [shape = 'u32[72,128]{1,0:T(1,128)}', space=vmem, size = 0x9000, scoped, tag = 'internal scratch']
  %s0 = inlined_call_operand.vmem [shape: bf16[16,192], index: 0, kind: input, shape index: {}]
  %s1 = inlined_call_operand.vmem [shape: bf16[192,32], index: 1, kind: input, shape index: {}]
  %s2 = inlined_call_operand.vmem [shape: f32[1,32], index: 2, kind: input, shape index: {}]
  %s3 = inlined_call_operand.hbm [shape: f32[16,32], index: 3, kind: output, shape index: {}]
  %s4 = sld [smem:[#allocation0]]
  $region22: #{tpu_custom_call.1} parent=0
    _
  %s6 = ssub.s32 1, %s4
  %s7 = scalar_select 0, %s6, %s4
  $region1: #{tpu_custom_call.1} parent=0
    #allocation2 [shape = 'u8[8192]{0}', space=vmem, size = 0x2000, scoped, tag = 'output window, operand 0, single buffered']
    #allocation3 [shape = 's32[1]{0}', space=sflag, size = 0x4, scoped, tag = 'scoped memory for tpu_custom_call.1']
    %8 = vsyncpa [#allocation3], 0
    // Predicated region
    $region2: #{tpu_custom_call.1} parent=1 // pred_check
      _
    $region3: #{tpu_custom_call.1} parent=1 // pred_check_branch
      %10 = sbr.rel (0) target = $region5
    $region4: #{tpu_custom_call.1} parent=1 // pred_region
      _
    $region5: #{tpu_custom_call.1} parent=1 // pred_fallthru
      _
    // Predicated region
    $region6: #{tpu_custom_call.1} parent=1 // pred_check
      _
    $region7: #{tpu_custom_call.1} parent=1 // pred_check_branch
      %12 = sbr.rel (0) target = $region9
    $region8: #{tpu_custom_call.1} parent=1 // pred_region
      _
    $region9: #{tpu_custom_call.1} parent=1 // pred_fallthru
      _
    // Predicated region
    $region10: #{tpu_custom_call.1} parent=1 // pred_check
      _
    $region11: #{tpu_custom_call.1} parent=1 // pred_check_branch
      %14 = sbr.rel (0) target = $region13
    $region12: #{tpu_custom_call.1} parent=1 // pred_region
      _
    $region13: #{tpu_custom_call.1} parent=1 // pred_fallthru
      _
    %v16 = vld [vmem:[%s0] sm:$0xff]
    %v17 = vld [vmem:[%s0 + $0x8] sm:$0xff]
    %v18 = vld [vmem:[%s1] sm:$0xf]
    %v19 = vld [vmem:[%s1 + $0x4] sm:$0xf]
    %v20 = vld [vmem:[%s1 + $0x8] sm:$0xf]
    %v21 = vld [vmem:[%s1 + $0xc] sm:$0xf]
    %v22 = vld [vmem:[%s1 + $0x10] sm:$0xf]
    %v23 = vld [vmem:[%s1 + $0x14] sm:$0xf]
    %v24 = vld [vmem:[%s1 + $0x18] sm:$0xf]
    %v25 = vld [vmem:[%s1 + $0x1c] sm:$0xf]
    %v26 = vld [vmem:[%s1 + $0x20] sm:$0xf]
    %v27 = vld [vmem:[%s1 + $0x24] sm:$0xf]
    %v28 = vld [vmem:[%s1 + $0x28] sm:$0xf]
    %v29 = vld [vmem:[%s1 + $0x2c] sm:$0xf]
    %v30 = vld [vmem:[%s1 + $0x30] sm:$0xf]
    %v31 = vld [vmem:[%s1 + $0x34] sm:$0xf]
    %v32 = vld [vmem:[%s1 + $0x38] sm:$0xf]
    %v33 = vld [vmem:[%s1 + $0x3c] sm:$0xf]
    %v34 = vld [vmem:[%s1 + $0x40] sm:$0xf]
    %v35 = vld [vmem:[%s1 + $0x44] sm:$0xf]
    %v36 = vld [vmem:[%s1 + $0x48] sm:$0xf]
    %v37 = vld [vmem:[%s1 + $0x4c] sm:$0xf]
    %v38 = vld [vmem:[%s1 + $0x50] sm:$0xf]
    %v39 = vld [vmem:[%s1 + $0x54] sm:$0xf]
    %v40 = vld [vmem:[%s1 + $0x58] sm:$0xf]
    %v41 = vld [vmem:[%s1 + $0x5c] sm:$0xf]
    %v42 = vld [vmem:[%s2] sm:$0x1]
    %v44 = vperm.slane %v42, 0
    %v48 = vunpack.c.l.b16 %v16
    %v49 = vunpack.c.h.b16 %v16
    %v50 = vunpack.c.l.b16 %v17
    %v51 = vunpack.c.h.b16 %v17
    %v52 = vpack.c.b16 %v50, %v48
    %v53 = vpack.c.b16 %v51, %v49
    %v79 = vunpack.c.l.b16 %v18
    %v80 = vunpack.c.l.b16 %v19
    %v81 = vunpack.c.l.b16 %v20
    %v82 = vunpack.c.l.b16 %v21
    %v83 = vunpack.c.l.b16 %v22
    %v84 = vunpack.c.l.b16 %v23
    %v85 = vunpack.c.l.b16 %v24
    %v86 = vunpack.c.l.b16 %v25
    %v87 = vunpack.c.l.b16 %v26
    %v88 = vunpack.c.l.b16 %v27
    %v89 = vunpack.c.l.b16 %v28
    %v90 = vunpack.c.l.b16 %v29
    %v91 = vunpack.c.l.b16 %v30
    %v92 = vunpack.c.l.b16 %v31
    %v93 = vunpack.c.l.b16 %v32
    %v94 = vunpack.c.l.b16 %v33
    %v95 = vunpack.c.l.b16 %v34
    %v96 = vunpack.c.l.b16 %v35
    %v97 = vunpack.c.l.b16 %v36
    %v98 = vunpack.c.l.b16 %v37
    %v99 = vunpack.c.l.b16 %v38
    %v100 = vunpack.c.l.b16 %v39
    %v101 = vunpack.c.l.b16 %v40
    %v102 = vunpack.c.l.b16 %v41
    %v103 = vpack.c.b16 %v80, %v79
    %v104 = vpack.c.b16 %v82, %v81
    %v105 = vpack.c.b16 %v84, %v83
    %v106 = vpack.c.b16 %v86, %v85
    %v107 = vpack.c.b16 %v88, %v87
    %v108 = vpack.c.b16 %v90, %v89
    %v109 = vpack.c.b16 %v92, %v91
    %v110 = vpack.c.b16 %v94, %v93
    %v111 = vpack.c.b16 %v96, %v95
    %v112 = vpack.c.b16 %v98, %v97
    %v113 = vpack.c.b16 %v100, %v99
    %v114 = vpack.c.b16 %v102, %v101
    %vm127 = vcmask 523264
    %v129 = vsel %vm127, %v53, 0
    %131 = vmatpush.bf16.msra.mxu0 %v110
    %132 = vmatpush.bf16.msra.mxu0 %v109
    %133 = vmatpush.bf16.msra.mxu0 %v108
    %134 = vmatpush.bf16.msra.mxu0 %v107
    %135 = vmatpush.bf16.msra.mxu0 %v106
    %136 = vmatpush.bf16.msra.mxu0 %v105
    %137 = vmatpush.bf16.msra.mxu0 %v104
    %138 = vmatpush.bf16.msra.mxu0 %v103
    %139 = vmatmul.bf16.gmra.mxu0 %v52
    %v140 = vpop.f32.mrf.mxu0
    %v141 = vadd.f32 %v44, %v140
    %v142 = vpop.f32.mrf.mxu0
    %v143 = vadd.f32 %v44, %v142
    %144 = vdwg.mxu0
    %145 = vmatpush.bf16.msra.mxu0 0
    %146 = vmatpush.bf16.msra.mxu0 0
    %147 = vmatpush.bf16.msra.mxu0 0
    %148 = vmatpush.bf16.msra.mxu0 0
    %149 = vmatpush.bf16.msra.mxu0 %v114
    %150 = vmatpush.bf16.msra.mxu0 %v113
    %151 = vmatpush.bf16.msra.mxu0 %v112
    %152 = vmatpush.bf16.msra.mxu0 %v111
    %153 = vmatmul.bf16.gmra.mxu0 %v129
    %v154 = vpop.f32.mrf.mxu0
    %v155 = vadd.f32 %v141, %v154
    %v156 = vpop.f32.mrf.mxu0
    %v157 = vadd.f32 %v143, %v156
    %158 = vdwg.mxu0
    %v159 = vtanh.pop %v155
    %v160 = vtanh.pop %v157
    %vm161 = vcmask 261120
    %162 = vst.msk [vmem:[#allocation2] sm:$0xff] %vm161, %v159
    %163 = vst.msk [vmem:[#allocation2 + $0x8] sm:$0xff] %vm161, %v160
    // Predicated region
    $region14: #{tpu_custom_call.1} parent=1 // pred_check
      _
    $region15: #{tpu_custom_call.1} parent=1 // pred_check_branch
      %165 = sbr.rel (0) target = $region17
    $region16: #{tpu_custom_call.1} parent=1 // pred_region
      %167 = vsyncadd [#allocation3], 0
      %s168 = sshll.u32 [#allocation2], 4
      %s169 = int_to_ptr.vmem [resolvable:$true] %s168
      %s170 = sshll.u32 %s3, 4
      %s171 = int_to_ptr.hbm [resolvable:$true] %s170
      %176 = dma.vmem_to_hbm [thread:$0]  %s169, 256, %s171, [#allocation3], 128, 128, 8
    $region17: #{tpu_custom_call.1} parent=1 // pred_fallthru
      _
    // Predicated region
    $region18: #{tpu_custom_call.1} parent=1 // pred_check
      _
    $region19: #{tpu_custom_call.1} parent=1 // pred_check_branch
      %178 = sbr.rel (0) target = $region21
    $region20: #{tpu_custom_call.1} parent=1 // pred_region
      %180 = dma.done [#allocation3], 256
    $region21: #{tpu_custom_call.1} parent=1 // pred_fallthru
      _
    %181 = vsyncpa [#allocation3], 1

</llo_original>
